<compile_context>
chip_gen: v7x
topology: tpu7x:2x2x1
jax: 0.10.0
libtpu: 0.0.40
codegen_flags: <defaults>
</compile_context>

<pallas_src>
import functools

import jax
import jax.numpy as jnp
import numpy as np
from jax.experimental import pallas as pl
from jax.experimental.pallas import tpu as pltpu


def _conv_relu_kernel(x_ref, w_ref, b_ref, o_ref, slab_ref,
                      *, K, H, W, OH, OW, C_in, C_out):
    """One batch element per grid step.

    x_ref:    (1, C_in, H*W)        spatially flattened input image (lane-dense)
    w_ref:    (C_out, K*K*C_in)     flattened weights, row order (kh, kw, ci)
    b_ref:    (C_out, 1)            bias
    o_ref:    (1, C_out, OH*OW)     spatially flattened output (lane-dense)
    slab_ref: (K*K*C_in, OH*W)      scratch: im2col slab, spatial on lanes
    """
    HW = H * W
    L = OH * W  # full-width window length; wrap-around cols cropped at store

    # 1) Implicit im2col: tap (kh, kw) is one contiguous lane slice of the
    #    flattened image -> slab row block [(kh*K+kw)*C_in : +C_in].
    #    Taps whose slice would run past H*W get their (cropped-anyway) tail
    #    filled with zeros to keep every read in-bounds.
    for kh in range(K):
        for kw in range(K):
            t = kh * K + kw
            s = kh * W + kw
            v = min(L, HW - s)
            slab_ref[t * C_in:(t + 1) * C_in, :v] = x_ref[0, :, s:s + v]
            if v < L:
                slab_ref[t * C_in:(t + 1) * C_in, v:] = jnp.zeros(
                    (C_in, L - v), jnp.float32)

    # 2) Single fused MXU matmul over the whole contraction depth K*K*C_in,
    #    lane-dense accumulator, + bias + ReLU.
    acc = jnp.dot(w_ref[...], slab_ref[...], preferred_element_type=jnp.float32)
    acc = jnp.maximum(acc + b_ref[...], 0.0)          # (C_out, OH*W)

    # 3) Crop the wrap-around columns (ow >= OW) and store the flattened
    #    spatial output directly (contiguous NCHW once reshaped in wrapper).
    if OW == W:
        o_ref[0, :, :] = acc.astype(o_ref.dtype)
    else:
        for oh in range(OH):
            o_ref[0, :, oh * OW:(oh + 1) * OW] = (
                acc[:, oh * W:oh * W + OW].astype(o_ref.dtype))


def conv2d_relu_pallas(x_nchw, weight_oihw, bias):
    """Conv2d (stride=1, padding=0, dilation=1, groups=1) + ReLU.

    x_nchw:      (N, C_in, H, W)     float32
    weight_oihw: (C_out, C_in, K, K) float32
    bias:        (C_out,)            float32
    returns:     (N, C_out, OH, OW)  float32   (PyTorch NCHW convention)
    """
    N, C_in, H, W = x_nchw.shape
    C_out, _, K, _ = weight_oihw.shape
    OH, OW = H - K + 1, W - K + 1

    # Free, contiguous reshape: NCHW -> (N, C_in, H*W)  (lane-dense input rows).
    x_flat = x_nchw.reshape(N, C_in, H * W)
    # One-time tiny parameter prep: OIHW -> (C_out, K*K*C_in), row order
    # (kh, kw, ci) matching the in-kernel slab; bias -> (C_out, 1).
    w_flat = jnp.transpose(weight_oihw, (0, 2, 3, 1)).reshape(C_out, K * K * C_in)
    b2d = bias.reshape(C_out, 1)

    kernel = functools.partial(
        _conv_relu_kernel, K=K, H=H, W=W, OH=OH, OW=OW, C_in=C_in, C_out=C_out)

    flops = 2 * N * OH * OW * K * K * C_in * C_out
    bytes_accessed = 4 * (x_flat.size + w_flat.size + b2d.size + N * C_out * OH * OW)

    out_flat = pl.pallas_call(
        kernel,
        out_shape=jax.ShapeDtypeStruct((N, C_out, OH * OW), jnp.float32),
        grid_spec=pltpu.PrefetchScalarGridSpec(
            num_scalar_prefetch=0,
            grid=(N,),
            in_specs=[
                pl.BlockSpec((1, C_in, H * W), lambda n: (n, 0, 0)),
                pl.BlockSpec((C_out, K * K * C_in), lambda n: (0, 0)),
                pl.BlockSpec((C_out, 1), lambda n: (0, 0)),
            ],
            out_specs=pl.BlockSpec((1, C_out, OH * OW), lambda n: (n, 0, 0)),
            scratch_shapes=[
                pltpu.VMEM((K * K * C_in, OH * W), jnp.float32),   # im2col slab
            ],
        ),
        compiler_params=pltpu.CompilerParams(
            dimension_semantics=("parallel",)),
        cost_estimate=pl.CostEstimate(
            flops=flops, transcendentals=0, bytes_accessed=bytes_accessed),
    )(x_flat, w_flat, b2d)

    # Free, contiguous reshape back to NCHW.
    return out_flat.reshape(N, C_out, OH, OW)


def _reference(x_nchw, weight_oihw, bias):
    out = jax.lax.conv_general_dilated(
        x_nchw, weight_oihw,
        window_strides=(1, 1), padding="VALID",
        dimension_numbers=("NCHW", "OIHW", "NCHW"),
    )
    return jnp.maximum(out + bias.reshape(1, -1, 1, 1), 0.0)


if __name__ == "__main__":
    key = jax.random.PRNGKey(0)
    k_x, k_w, k_b = jax.random.split(key, 3)

    N, C_in, H, W = 2, 4, 16, 16
    C_out, K = 8, 3

    x = jax.random.normal(k_x, (N, C_in, H, W), dtype=jnp.float32)

    # Deterministic parameter init (kaiming-uniform-like scale, as in nn.Conv2d).
    fan_in = C_in * K * K
    bound = 1.0 / np.sqrt(fan_in)
    weight = jax.random.uniform(
        k_w, (C_out, C_in, K, K), dtype=jnp.float32, minval=-bound, maxval=bound
    )
    bias = jax.random.uniform(
        k_b, (C_out,), dtype=jnp.float32, minval=-bound, maxval=bound
    )

    out = jax.block_until_ready(conv2d_relu_pallas(x, weight, bias))
    ref = jax.block_until_ready(_reference(x, weight, bias))
    np.testing.assert_allclose(np.asarray(out), np.asarray(ref), rtol=1e-5, atol=1e-5)

    print("KERNEL_OK")
</pallas_src>

<mosaic_0001>
module attributes {stable_mosaic.version = 11 : i64} {
  func.func @_conv_relu_kernel(%arg0: i32, %arg1: memref<1x4x256xf32, #tpu.memory_space<vmem>>, %arg2: memref<8x36xf32, #tpu.memory_space<vmem>>, %arg3: memref<8x1xf32, #tpu.memory_space<vmem>>, %arg4: memref<1x8x196xf32, #tpu.memory_space<vmem>>, %arg5: memref<36x224xf32, #tpu.memory_space<vmem>>) attributes {dimension_semantics = [#tpu.dimension_semantics<parallel>], iteration_bounds = array<i64: 2>, scalar_prefetch = 0 : i64, scratch_operands = 1 : i64, tpu.core_type = #tpu.core_type<tc>, window_params = [{transform_indices = @transform_0, window_bounds = array<i64: 1, 4, 256>}, {pipeline_mode = #tpu.pipeline_mode<synchronous>, transform_indices = @transform_1, window_bounds = array<i64: 8, 36>}, {pipeline_mode = #tpu.pipeline_mode<synchronous>, transform_indices = @transform_2, window_bounds = array<i64: 8, 1>}, {transform_indices = @transform_3, window_bounds = array<i64: 1, 8, 196>}]} {
    %c0 = arith.constant 0 : index
    %c0_0 = arith.constant 0 : index
    %c0_1 = arith.constant 0 : index
    %0 = vector.load %arg1[%c0, %c0_0, %c0_1] : memref<1x4x256xf32, #tpu.memory_space<vmem>>, vector<1x4x224xf32>
    %1 = vector.shape_cast %0 : vector<1x4x224xf32> to vector<4x224xf32>
    %c0_2 = arith.constant 0 : index
    %c0_3 = arith.constant 0 : index
    %2 = vector.load %arg5[%c0_2, %c0_3] : memref<36x224xf32, #tpu.memory_space<vmem>>, vector<4x224xf32>
    tpu.vector_store %arg5[%c0_2, %c0_3], %1 {strides = array<i32>} : memref<36x224xf32, #tpu.memory_space<vmem>>, vector<4x224xf32>,
    %c0_4 = arith.constant 0 : index
    %c0_5 = arith.constant 0 : index
    %c1 = arith.constant 1 : index
    %3 = vector.load %arg1[%c0_4, %c0_5, %c1] : memref<1x4x256xf32, #tpu.memory_space<vmem>>, vector<1x4x224xf32>
    %4 = vector.shape_cast %3 : vector<1x4x224xf32> to vector<4x224xf32>
    %c4 = arith.constant 4 : index
    %c0_6 = arith.constant 0 : index
    %5 = vector.load %arg5[%c4, %c0_6] : memref<36x224xf32, #tpu.memory_space<vmem>>, vector<4x224xf32>
    tpu.vector_store %arg5[%c4, %c0_6], %4 {strides = array<i32>} : memref<36x224xf32, #tpu.memory_space<vmem>>, vector<4x224xf32>,
    %c0_7 = arith.constant 0 : index
    %c0_8 = arith.constant 0 : index
    %c2 = arith.constant 2 : index
    %6 = vector.load %arg1[%c0_7, %c0_8, %c2] : memref<1x4x256xf32, #tpu.memory_space<vmem>>, vector<1x4x224xf32>
    %7 = vector.shape_cast %6 : vector<1x4x224xf32> to vector<4x224xf32>
    %c8 = arith.constant 8 : index
    %c0_9 = arith.constant 0 : index
    %8 = vector.load %arg5[%c8, %c0_9] : memref<36x224xf32, #tpu.memory_space<vmem>>, vector<4x224xf32>
    tpu.vector_store %arg5[%c8, %c0_9], %7 {strides = array<i32>} : memref<36x224xf32, #tpu.memory_space<vmem>>, vector<4x224xf32>,
    %c0_10 = arith.constant 0 : index
    %c0_11 = arith.constant 0 : index
    %c16 = arith.constant 16 : index
    %9 = vector.load %arg1[%c0_10, %c0_11, %c16] : memref<1x4x256xf32, #tpu.memory_space<vmem>>, vector<1x4x224xf32>
    %10 = vector.shape_cast %9 : vector<1x4x224xf32> to vector<4x224xf32>
    %c12 = arith.constant 12 : index
    %c0_12 = arith.constant 0 : index
    %11 = vector.load %arg5[%c12, %c0_12] : memref<36x224xf32, #tpu.memory_space<vmem>>, vector<4x224xf32>
    tpu.vector_store %arg5[%c12, %c0_12], %10 {strides = array<i32>} : memref<36x224xf32, #tpu.memory_space<vmem>>, vector<4x224xf32>,
    %c0_13 = arith.constant 0 : index
    %c0_14 = arith.constant 0 : index
    %c17 = arith.constant 17 : index
    %12 = vector.load %arg1[%c0_13, %c0_14, %c17] : memref<1x4x256xf32, #tpu.memory_space<vmem>>, vector<1x4x224xf32>
    %13 = vector.shape_cast %12 : vector<1x4x224xf32> to vector<4x224xf32>
    %c16_15 = arith.constant 16 : index
    %c0_16 = arith.constant 0 : index
    %14 = vector.load %arg5[%c16_15, %c0_16] : memref<36x224xf32, #tpu.memory_space<vmem>>, vector<4x224xf32>
    tpu.vector_store %arg5[%c16_15, %c0_16], %13 {strides = array<i32>} : memref<36x224xf32, #tpu.memory_space<vmem>>, vector<4x224xf32>,
    %c0_17 = arith.constant 0 : index
    %c0_18 = arith.constant 0 : index
    %c18 = arith.constant 18 : index
    %15 = vector.load %arg1[%c0_17, %c0_18, %c18] : memref<1x4x256xf32, #tpu.memory_space<vmem>>, vector<1x4x224xf32>
    %16 = vector.shape_cast %15 : vector<1x4x224xf32> to vector<4x224xf32>
    %c20 = arith.constant 20 : index
    %c0_19 = arith.constant 0 : index
    %17 = vector.load %arg5[%c20, %c0_19] : memref<36x224xf32, #tpu.memory_space<vmem>>, vector<4x224xf32>
    tpu.vector_store %arg5[%c20, %c0_19], %16 {strides = array<i32>} : memref<36x224xf32, #tpu.memory_space<vmem>>, vector<4x224xf32>,
    %c0_20 = arith.constant 0 : index
    %c0_21 = arith.constant 0 : index
    %c32 = arith.constant 32 : index
    %18 = vector.load %arg1[%c0_20, %c0_21, %c32] : memref<1x4x256xf32, #tpu.memory_space<vmem>>, vector<1x4x224xf32>
    %19 = vector.shape_cast %18 : vector<1x4x224xf32> to vector<4x224xf32>
    %c24 = arith.constant 24 : index
    %c0_22 = arith.constant 0 : index
    %20 = vector.load %arg5[%c24, %c0_22] : memref<36x224xf32, #tpu.memory_space<vmem>>, vector<4x224xf32>
    tpu.vector_store %arg5[%c24, %c0_22], %19 {strides = array<i32>} : memref<36x224xf32, #tpu.memory_space<vmem>>, vector<4x224xf32>,
    %c0_23 = arith.constant 0 : index
    %c0_24 = arith.constant 0 : index
    %c33 = arith.constant 33 : index
    %21 = vector.load %arg1[%c0_23, %c0_24, %c33] : memref<1x4x256xf32, #tpu.memory_space<vmem>>, vector<1x4x223xf32>
    %22 = vector.shape_cast %21 : vector<1x4x223xf32> to vector<4x223xf32>
    %c28 = arith.constant 28 : index
    %c0_25 = arith.constant 0 : index
    %23 = vector.load %arg5[%c28, %c0_25] : memref<36x224xf32, #tpu.memory_space<vmem>>, vector<4x223xf32>
    tpu.vector_store %arg5[%c28, %c0_25], %22 {strides = array<i32>} : memref<36x224xf32, #tpu.memory_space<vmem>>, vector<4x223xf32>,
    %cst = arith.constant 0.000000e+00 : f32
    %24 = vector.broadcast %cst : f32 to vector<4x1xf32>
    %c28_26 = arith.constant 28 : index
    %c223 = arith.constant 223 : index
    %25 = vector.load %arg5[%c28_26, %c223] : memref<36x224xf32, #tpu.memory_space<vmem>>, vector<4x1xf32>
    tpu.vector_store %arg5[%c28_26, %c223], %24 {strides = array<i32>} : memref<36x224xf32, #tpu.memory_space<vmem>>, vector<4x1xf32>,
    %c0_27 = arith.constant 0 : index
    %c0_28 = arith.constant 0 : index
    %c34 = arith.constant 34 : index
    %26 = vector.load %arg1[%c0_27, %c0_28, %c34] : memref<1x4x256xf32, #tpu.memory_space<vmem>>, vector<1x4x222xf32>
    %27 = vector.shape_cast %26 : vector<1x4x222xf32> to vector<4x222xf32>
    %c32_29 = arith.constant 32 : index
    %c0_30 = arith.constant 0 : index
    %28 = vector.load %arg5[%c32_29, %c0_30] : memref<36x224xf32, #tpu.memory_space<vmem>>, vector<4x222xf32>
    tpu.vector_store %arg5[%c32_29, %c0_30], %27 {strides = array<i32>} : memref<36x224xf32, #tpu.memory_space<vmem>>, vector<4x222xf32>,
    %cst_31 = arith.constant 0.000000e+00 : f32
    %29 = vector.broadcast %cst_31 : f32 to vector<4x2xf32>
    %c32_32 = arith.constant 32 : index
    %c222 = arith.constant 222 : index
    %30 = vector.load %arg5[%c32_32, %c222] : memref<36x224xf32, #tpu.memory_space<vmem>>, vector<4x2xf32>
    tpu.vector_store %arg5[%c32_32, %c222], %29 {strides = array<i32>} : memref<36x224xf32, #tpu.memory_space<vmem>>, vector<4x2xf32>,
    %c0_33 = arith.constant 0 : index
    %c0_34 = arith.constant 0 : index
    %31 = vector.load %arg2[%c0_33, %c0_34] : memref<8x36xf32, #tpu.memory_space<vmem>>, vector<8x36xf32>
    %c0_35 = arith.constant 0 : index
    %c0_36 = arith.constant 0 : index
    %32 = vector.load %arg5[%c0_35, %c0_36] : memref<36x224xf32, #tpu.memory_space<vmem>>, vector<36x224xf32>
    %cst_37 = arith.constant dense<0.000000e+00> : vector<8x224xf32>
    %33 = tpu.matmul %31, %32, %cst_37 {dimension_numbers = #tpu.dot_dimension_numbers<[1], [0], [0], [1], [0, 0, 1, 1], [], []>} : vector<8x36xf32>, vector<36x224xf32>, vector<8x224xf32> -> vector<8x224xf32>
    %c0_38 = arith.constant 0 : index
    %c0_39 = arith.constant 0 : index
    %34 = vector.load %arg3[%c0_38, %c0_39] : memref<8x1xf32, #tpu.memory_space<vmem>>, vector<8x1xf32>
    %35 = vector.broadcast %34 : vector<8x1xf32> to vector<8x224xf32>
    %36 = arith.addf %33, %35 : vector<8x224xf32>
    %cst_40 = arith.constant 0.000000e+00 : f32
    %37 = vector.broadcast %cst_40 : f32 to vector<8x224xf32>
    %38 = arith.maximumf %36, %37 : vector<8x224xf32>
    %39 = vector.extract_strided_slice %38 {offsets = [0, 0], sizes = [8, 14], strides = [1, 1]} : vector<8x224xf32> to vector<8x14xf32>
    %c0_41 = arith.constant 0 : index
    %c0_42 = arith.constant 0 : index
    %c0_43 = arith.constant 0 : index
    %40 = vector.load %arg4[%c0_41, %c0_42, %c0_43] : memref<1x8x196xf32, #tpu.memory_space<vmem>>, vector<1x8x14xf32>
    %41 = vector.shape_cast %40 : vector<1x8x14xf32> to vector<8x14xf32>
    %42 = vector.shape_cast %39 : vector<8x14xf32> to vector<1x8x14xf32>
    tpu.vector_store %arg4[%c0_41, %c0_42, %c0_43], %42 {strides = array<i32>} : memref<1x8x196xf32, #tpu.memory_space<vmem>>, vector<1x8x14xf32>,
    %43 = vector.extract_strided_slice %38 {offsets = [0, 16], sizes = [8, 14], strides = [1, 1]} : vector<8x224xf32> to vector<8x14xf32>
    %c0_44 = arith.constant 0 : index
    %c0_45 = arith.constant 0 : index
    %c14 = arith.constant 14 : index
    %44 = vector.load %arg4[%c0_44, %c0_45, %c14] : memref<1x8x196xf32, #tpu.memory_space<vmem>>, vector<1x8x14xf32>
    %45 = vector.shape_cast %44 : vector<1x8x14xf32> to vector<8x14xf32>
    %46 = vector.shape_cast %43 : vector<8x14xf32> to vector<1x8x14xf32>
    tpu.vector_store %arg4[%c0_44, %c0_45, %c14], %46 {strides = array<i32>} : memref<1x8x196xf32, #tpu.memory_space<vmem>>, vector<1x8x14xf32>,
    %47 = vector.extract_strided_slice %38 {offsets = [0, 32], sizes = [8, 14], strides = [1, 1]} : vector<8x224xf32> to vector<8x14xf32>
    %c0_46 = arith.constant 0 : index
    %c0_47 = arith.constant 0 : index
    %c28_48 = arith.constant 28 : index
    %48 = vector.load %arg4[%c0_46, %c0_47, %c28_48] : memref<1x8x196xf32, #tpu.memory_space<vmem>>, vector<1x8x14xf32>
    %49 = vector.shape_cast %48 : vector<1x8x14xf32> to vector<8x14xf32>
    %50 = vector.shape_cast %47 : vector<8x14xf32> to vector<1x8x14xf32>
    tpu.vector_store %arg4[%c0_46, %c0_47, %c28_48], %50 {strides = array<i32>} : memref<1x8x196xf32, #tpu.memory_space<vmem>>, vector<1x8x14xf32>,
    %51 = vector.extract_strided_slice %38 {offsets = [0, 48], sizes = [8, 14], strides = [1, 1]} : vector<8x224xf32> to vector<8x14xf32>
    %c0_49 = arith.constant 0 : index
    %c0_50 = arith.constant 0 : index
    %c42 = arith.constant 42 : index
    %52 = vector.load %arg4[%c0_49, %c0_50, %c42] : memref<1x8x196xf32, #tpu.memory_space<vmem>>, vector<1x8x14xf32>
    %53 = vector.shape_cast %52 : vector<1x8x14xf32> to vector<8x14xf32>
    %54 = vector.shape_cast %51 : vector<8x14xf32> to vector<1x8x14xf32>
    tpu.vector_store %arg4[%c0_49, %c0_50, %c42], %54 {strides = array<i32>} : memref<1x8x196xf32, #tpu.memory_space<vmem>>, vector<1x8x14xf32>,
    %55 = vector.extract_strided_slice %38 {offsets = [0, 64], sizes = [8, 14], strides = [1, 1]} : vector<8x224xf32> to vector<8x14xf32>
    %c0_51 = arith.constant 0 : index
    %c0_52 = arith.constant 0 : index
    %c56 = arith.constant 56 : index
    %56 = vector.load %arg4[%c0_51, %c0_52, %c56] : memref<1x8x196xf32, #tpu.memory_space<vmem>>, vector<1x8x14xf32>
    %57 = vector.shape_cast %56 : vector<1x8x14xf32> to vector<8x14xf32>
    %58 = vector.shape_cast %55 : vector<8x14xf32> to vector<1x8x14xf32>
    tpu.vector_store %arg4[%c0_51, %c0_52, %c56], %58 {strides = array<i32>} : memref<1x8x196xf32, #tpu.memory_space<vmem>>, vector<1x8x14xf32>,
    %59 = vector.extract_strided_slice %38 {offsets = [0, 80], sizes = [8, 14], strides = [1, 1]} : vector<8x224xf32> to vector<8x14xf32>
    %c0_53 = arith.constant 0 : index
    %c0_54 = arith.constant 0 : index
    %c70 = arith.constant 70 : index
    %60 = vector.load %arg4[%c0_53, %c0_54, %c70] : memref<1x8x196xf32, #tpu.memory_space<vmem>>, vector<1x8x14xf32>
    %61 = vector.shape_cast %60 : vector<1x8x14xf32> to vector<8x14xf32>
    %62 = vector.shape_cast %59 : vector<8x14xf32> to vector<1x8x14xf32>
    tpu.vector_store %arg4[%c0_53, %c0_54, %c70], %62 {strides = array<i32>} : memref<1x8x196xf32, #tpu.memory_space<vmem>>, vector<1x8x14xf32>,
    %63 = vector.extract_strided_slice %38 {offsets = [0, 96], sizes = [8, 14], strides = [1, 1]} : vector<8x224xf32> to vector<8x14xf32>
    %c0_55 = arith.constant 0 : index
    %c0_56 = arith.constant 0 : index
    %c84 = arith.constant 84 : index
    %64 = vector.load %arg4[%c0_55, %c0_56, %c84] : memref<1x8x196xf32, #tpu.memory_space<vmem>>, vector<1x8x14xf32>
    %65 = vector.shape_cast %64 : vector<1x8x14xf32> to vector<8x14xf32>
    %66 = vector.shape_cast %63 : vector<8x14xf32> to vector<1x8x14xf32>
    tpu.vector_store %arg4[%c0_55, %c0_56, %c84], %66 {strides = array<i32>} : memref<1x8x196xf32, #tpu.memory_space<vmem>>, vector<1x8x14xf32>,
    %67 = vector.extract_strided_slice %38 {offsets = [0, 112], sizes = [8, 14], strides = [1, 1]} : vector<8x224xf32> to vector<8x14xf32>
    %c0_57 = arith.constant 0 : index
    %c0_58 = arith.constant 0 : index
    %c98 = arith.constant 98 : index
    %68 = vector.load %arg4[%c0_57, %c0_58, %c98] : memref<1x8x196xf32, #tpu.memory_space<vmem>>, vector<1x8x14xf32>
    %69 = vector.shape_cast %68 : vector<1x8x14xf32> to vector<8x14xf32>
    %70 = vector.shape_cast %67 : vector<8x14xf32> to vector<1x8x14xf32>
    tpu.vector_store %arg4[%c0_57, %c0_58, %c98], %70 {strides = array<i32>} : memref<1x8x196xf32, #tpu.memory_space<vmem>>, vector<1x8x14xf32>,
    %71 = vector.extract_strided_slice %38 {offsets = [0, 128], sizes = [8, 14], strides = [1, 1]} : vector<8x224xf32> to vector<8x14xf32>
    %c0_59 = arith.constant 0 : index
    %c0_60 = arith.constant 0 : index
    %c112 = arith.constant 112 : index
    %72 = vector.load %arg4[%c0_59, %c0_60, %c112] : memref<1x8x196xf32, #tpu.memory_space<vmem>>, vector<1x8x14xf32>
    %73 = vector.shape_cast %72 : vector<1x8x14xf32> to vector<8x14xf32>
    %74 = vector.shape_cast %71 : vector<8x14xf32> to vector<1x8x14xf32>
    tpu.vector_store %arg4[%c0_59, %c0_60, %c112], %74 {strides = array<i32>} : memref<1x8x196xf32, #tpu.memory_space<vmem>>, vector<1x8x14xf32>,
    %75 = vector.extract_strided_slice %38 {offsets = [0, 144], sizes = [8, 14], strides = [1, 1]} : vector<8x224xf32> to vector<8x14xf32>
    %c0_61 = arith.constant 0 : index
    %c0_62 = arith.constant 0 : index
    %c126 = arith.constant 126 : index
    %76 = vector.load %arg4[%c0_61, %c0_62, %c126] : memref<1x8x196xf32, #tpu.memory_space<vmem>>, vector<1x8x14xf32>
    %77 = vector.shape_cast %76 : vector<1x8x14xf32> to vector<8x14xf32>
    %78 = vector.shape_cast %75 : vector<8x14xf32> to vector<1x8x14xf32>
    tpu.vector_store %arg4[%c0_61, %c0_62, %c126], %78 {strides = array<i32>} : memref<1x8x196xf32, #tpu.memory_space<vmem>>, vector<1x8x14xf32>,
    %79 = vector.extract_strided_slice %38 {offsets = [0, 160], sizes = [8, 14], strides = [1, 1]} : vector<8x224xf32> to vector<8x14xf32>
    %c0_63 = arith.constant 0 : index
    %c0_64 = arith.constant 0 : index
    %c140 = arith.constant 140 : index
    %80 = vector.load %arg4[%c0_63, %c0_64, %c140] : memref<1x8x196xf32, #tpu.memory_space<vmem>>, vector<1x8x14xf32>
    %81 = vector.shape_cast %80 : vector<1x8x14xf32> to vector<8x14xf32>
    %82 = vector.shape_cast %79 : vector<8x14xf32> to vector<1x8x14xf32>
    tpu.vector_store %arg4[%c0_63, %c0_64, %c140], %82 {strides = array<i32>} : memref<1x8x196xf32, #tpu.memory_space<vmem>>, vector<1x8x14xf32>,
    %83 = vector.extract_strided_slice %38 {offsets = [0, 176], sizes = [8, 14], strides = [1, 1]} : vector<8x224xf32> to vector<8x14xf32>
    %c0_65 = arith.constant 0 : index
    %c0_66 = arith.constant 0 : index
    %c154 = arith.constant 154 : index
    %84 = vector.load %arg4[%c0_65, %c0_66, %c154] : memref<1x8x196xf32, #tpu.memory_space<vmem>>, vector<1x8x14xf32>
    %85 = vector.shape_cast %84 : vector<1x8x14xf32> to vector<8x14xf32>
    %86 = vector.shape_cast %83 : vector<8x14xf32> to vector<1x8x14xf32>
    tpu.vector_store %arg4[%c0_65, %c0_66, %c154], %86 {strides = array<i32>} : memref<1x8x196xf32, #tpu.memory_space<vmem>>, vector<1x8x14xf32>,
    %87 = vector.extract_strided_slice %38 {offsets = [0, 192], sizes = [8, 14], strides = [1, 1]} : vector<8x224xf32> to vector<8x14xf32>
    %c0_67 = arith.constant 0 : index
    %c0_68 = arith.constant 0 : index
    %c168 = arith.constant 168 : index
    %88 = vector.load %arg4[%c0_67, %c0_68, %c168] : memref<1x8x196xf32, #tpu.memory_space<vmem>>, vector<1x8x14xf32>
    %89 = vector.shape_cast %88 : vector<1x8x14xf32> to vector<8x14xf32>
    %90 = vector.shape_cast %87 : vector<8x14xf32> to vector<1x8x14xf32>
    tpu.vector_store %arg4[%c0_67, %c0_68, %c168], %90 {strides = array<i32>} : memref<1x8x196xf32, #tpu.memory_space<vmem>>, vector<1x8x14xf32>,
    %91 = vector.extract_strided_slice %38 {offsets = [0, 208], sizes = [8, 14], strides = [1, 1]} : vector<8x224xf32> to vector<8x14xf32>
    %c0_69 = arith.constant 0 : index
    %c0_70 = arith.constant 0 : index
    %c182 = arith.constant 182 : index
    %92 = vector.load %arg4[%c0_69, %c0_70, %c182] : memref<1x8x196xf32, #tpu.memory_space<vmem>>, vector<1x8x14xf32>
    %93 = vector.shape_cast %92 : vector<1x8x14xf32> to vector<8x14xf32>
    %94 = vector.shape_cast %91 : vector<8x14xf32> to vector<1x8x14xf32>
    tpu.vector_store %arg4[%c0_69, %c0_70, %c182], %94 {strides = array<i32>} : memref<1x8x196xf32, #tpu.memory_space<vmem>>, vector<1x8x14xf32>,
    return
  }
  func.func @transform_0(%arg0: i32) -> (i32, i32, i32) {
    %c0_i32 = arith.constant 0 : i32
    %c0_i32_0 = arith.constant 0 : i32
    %c0_i32_1 = arith.constant 0 : i32
    return %arg0, %c0_i32, %c0_i32_0 : i32, i32, i32
  }
  func.func @transform_1(%arg0: i32) -> (i32, i32) {
    %c0_i32 = arith.constant 0 : i32
    %c0_i32_0 = arith.constant 0 : i32
    %c0_i32_1 = arith.constant 0 : i32
    return %c0_i32, %c0_i32_0 : i32, i32
  }
  func.func @transform_2(%arg0: i32) -> (i32, i32) {
    %c0_i32 = arith.constant 0 : i32
    %c0_i32_0 = arith.constant 0 : i32
    %c0_i32_1 = arith.constant 0 : i32
    return %c0_i32, %c0_i32_0 : i32, i32
  }
  func.func @transform_3(%arg0: i32) -> (i32, i32, i32) {
    %c0_i32 = arith.constant 0 : i32
    %c0_i32_0 = arith.constant 0 : i32
    %c0_i32_1 = arith.constant 0 : i32
    return %arg0, %c0_i32, %c0_i32_0 : i32, i32, i32
  }
}

</mosaic_0001>

<llo_original>
// kernel: tpu_custom_call.1
$region0: #{tpu_custom_call.1}
  #allocation0 [shape = 'u32[]', space=smem, size = 0x4, offset = 0x4, fixed_abs, tag = 'smem constant byte address 0x4 - core index']
  #allocation1 [shape = 'u32[144,128]{1,0:T(1,128)}', space=vmem, size = 0x12000, scoped, tag = 'internal scratch']
  #allocation2 [shape = 'f32[36,224]{1,0:T(8,128)}', space=vmem, size = 0xa000, scoped, tag = 'scratch operand']
  %s0 = inlined_call_operand.hbm [shape: f32[2,4,256], index: 0, kind: input, shape index: {}]
  %s1 = inlined_call_operand.vmem [shape: f32[8,36], index: 1, kind: input, shape index: {}]
  %s2 = inlined_call_operand.vmem [shape: f32[8,1], index: 2, kind: input, shape index: {}]
  %s3 = inlined_call_operand.hbm [shape: f32[2,8,196], index: 3, kind: output, shape index: {}]
  %s4 = sld [smem:[#allocation0]]
  $region49: #{tpu_custom_call.1} parent=0
    _
  %s6 = ssub.s32 1, %s4
  %s7 = scalar_select 0, %s6, %s4
  $region1: #{tpu_custom_call.1} parent=0
    #allocation3 [shape = 'u8[8192]{0}', space=vmem, size = 0x2000, scoped, tag = 'input window, operand 0']
    #allocation4 [shape = 's32[2]{0}', space=sflag, size = 0x8, scoped, tag = 'scoped memory for tpu_custom_call.1']
    #allocation5 [shape = 's32[2]{0}', space=sflag, size = 0x8, scoped, tag = 'scoped memory for tpu_custom_call.1']
    #allocation6 [shape = 'u8[16384]{0}', space=vmem, size = 0x4000, scoped, tag = 'output window, operand 0']
    %8 = vsyncpa [#allocation4], 0
    %s9 = scalar_lea.sflag [#allocation4], 1
    %10 = vsyncpa %s9, 0
    %11 = vsyncpa [#allocation5], 0
    %s12 = scalar_lea.sflag [#allocation5], 1
    %13 = vsyncpa %s12, 0
    loop: start=0, step=1, limit=4
    $region2: #{tpu_custom_call.1} parent=1 // loop_pre_header
      _
    $region3: #{tpu_custom_call.1} parent=1 // loop_header
      %s15 = sphi 0, %s19
      %p16 = scmp.ge.s32.totalorder %s15, 4
      %s25 = sphi 0, %s27
      %s28 = sphi 0, %s25
      %s29 = sphi 0, %s28
      %s45 = sphi 0, %s29
      %s49 = sphi 0, %s49
      %s51 = sphi 0, %s49
      %s52 = sphi 0, %s51
      %s66 = sphi 0, %s52
      %s70 = sphi 0, %s70
      %s72 = sphi 0, %s70
      %s73 = sphi 0, %s72
      %s87 = sphi 0, %s73
      %s93 = sphi 0, %s95
      %s96 = sphi 0, %s93
      %s97 = sphi 0, %s96
      %s113 = sphi 0, %s97
    $region4: #{tpu_custom_call.1} parent=1 // loop_header_branch
      %18 = sbr.rel (%p16) target = $region8
    $region5: #{tpu_custom_call.1} parent=1 // loop_body
      %s20 = ssub.s32 %s15, 1
      %s21 = ssub.s32 %s15, 2
      %s22 = sadd.s32 %s15, 1
      %s23 = ssub.s32 %s15, %s22
      %p24 = scmp.eq.s32.totalorder %s23, 0
      %s26 = sadd.s32 %s25, 1
      %s27 = scalar_select %p24, %s25, %s26
      %p30 = pneg %p24
      %p31 = scmp.eq.s32.totalorder %s15, 1
      %p32 = por %p30, %p31
      %p33 = scmp.ne.s32.totalorder %s25, %s28
      %p34 = scmp.eq.s32.totalorder %s15, 0
      %p35 = por %p33, %p34
      %p36 = scmp.ne.s32.totalorder %s25, %s28
      %p37 = scmp.eq.s32.totalorder %s20, 1
      %p38 = por %p36, %p37
      %p39 = scmp.ne.s32.totalorder %s28, %s29
      %p40 = scmp.eq.s32.totalorder %s20, 0
      %p41 = por %p39, %p40
      %p42 = scmp.ne.s32.totalorder %s28, %s29
      %p43 = scmp.eq.s32.totalorder %s21, 1
      %p44 = por %p42, %p43
      %p46 = scmp.ne.s32.totalorder %s29, %s45
      %p47 = scmp.eq.s32.totalorder %s21, 0
      %p48 = por %p46, %p47
      %s50 = sadd.s32 %s49, 1
      %p53 = scmp.eq.s32.totalorder %s15, 1
      %p54 = scmp.ne.s32.totalorder %s49, %s51
      %p55 = scmp.eq.s32.totalorder %s15, 0
      %p56 = por %p54, %p55
      %p57 = scmp.ne.s32.totalorder %s49, %s51
      %p58 = scmp.eq.s32.totalorder %s20, 1
      %p59 = por %p57, %p58
      %p60 = scmp.ne.s32.totalorder %s51, %s52
      %p61 = scmp.eq.s32.totalorder %s20, 0
      %p62 = por %p60, %p61
      %p63 = scmp.ne.s32.totalorder %s51, %s52
      %p64 = scmp.eq.s32.totalorder %s21, 1
      %p65 = por %p63, %p64
      %p67 = scmp.ne.s32.totalorder %s52, %s66
      %p68 = scmp.eq.s32.totalorder %s21, 0
      %p69 = por %p67, %p68
      %s71 = sadd.s32 %s70, 1
      %p74 = scmp.eq.s32.totalorder %s15, 1
      %p75 = scmp.ne.s32.totalorder %s70, %s72
      %p76 = scmp.eq.s32.totalorder %s15, 0
      %p77 = por %p75, %p76
      %p78 = scmp.ne.s32.totalorder %s70, %s72
      %p79 = scmp.eq.s32.totalorder %s20, 1
      %p80 = por %p78, %p79
      %p81 = scmp.ne.s32.totalorder %s72, %s73
      %p82 = scmp.eq.s32.totalorder %s20, 0
      %p83 = por %p81, %p82
      %p84 = scmp.ne.s32.totalorder %s72, %s73
      %p85 = scmp.eq.s32.totalorder %s21, 1
      %p86 = por %p84, %p85
      %p88 = scmp.ne.s32.totalorder %s73, %s87
      %p89 = scmp.eq.s32.totalorder %s21, 0
      %p90 = por %p88, %p89
      %s91 = ssub.s32 %s15, %s22
      %p92 = scmp.eq.s32.totalorder %s91, 0
      %s94 = sadd.s32 %s93, 1
      %s95 = scalar_select %p92, %s93, %s94
      %p98 = pneg %p92
      %p99 = scmp.eq.s32.totalorder %s15, 1
      %p100 = por %p98, %p99
      %p101 = scmp.ne.s32.totalorder %s93, %s96
      %p102 = scmp.eq.s32.totalorder %s15, 0
      %p103 = por %p101, %p102
      %p104 = scmp.ne.s32.totalorder %s93, %s96
      %p105 = scmp.eq.s32.totalorder %s20, 1
      %p106 = por %p104, %p105
      %p107 = scmp.ne.s32.totalorder %s96, %s97
      %p108 = scmp.eq.s32.totalorder %s20, 0
      %p109 = por %p107, %p108
      %p110 = scmp.ne.s32.totalorder %s96, %s97
      %p111 = scmp.eq.s32.totalorder %s21, 1
      %p112 = por %p110, %p111
      %p114 = scmp.ne.s32.totalorder %s97, %s113
      %p115 = scmp.eq.s32.totalorder %s21, 0
      %p116 = por %p114, %p115
      %p117 = scmp.le.s32.totalorder 1, %s15
      %p118 = scmp.lt.s32.totalorder %s15, 3
      %p119 = pnand %p117, %p118
      %p120 = pneg %p119
      // Predicated region
      $region9: #{tpu_custom_call.1} parent=5 // pred_check
        _
      $region10: #{tpu_custom_call.1} parent=5 // pred_check_branch
        %122 = sbr.rel (%p119) target = $region12
      $region11: #{tpu_custom_call.1} parent=5 // pred_region
        %s123 = ssub.s32 %s15, 1
        // Predicated region
        $region13: #{tpu_custom_call.1} parent=11 // pred_check
          %p124 = pneg %p62
        $region14: #{tpu_custom_call.1} parent=11 // pred_check_branch
          %126 = sbr.rel (%p124) target = $region16
        $region15: #{tpu_custom_call.1} parent=11 // pred_region
          _
        $region16: #{tpu_custom_call.1} parent=11 // pred_fallthru
          _
        // Predicated region
        $region17: #{tpu_custom_call.1} parent=11 // pred_check
          %p127 = pneg %p83
        $region18: #{tpu_custom_call.1} parent=11 // pred_check_branch
          %129 = sbr.rel (%p127) target = $region20
        $region19: #{tpu_custom_call.1} parent=11 // pred_region
          _
        $region20: #{tpu_custom_call.1} parent=11 // pred_fallthru
          _
      $region12: #{tpu_custom_call.1} parent=5 // pred_fallthru
        _
      %p130 = scmp.lt.s32.totalorder %s15, 2
      // Predicated region
      $region21: #{tpu_custom_call.1} parent=5 // pred_check
        %p131 = pneg %p130
      $region22: #{tpu_custom_call.1} parent=5 // pred_check_branch
        %133 = sbr.rel (%p131) target = $region24
      $region23: #{tpu_custom_call.1} parent=5 // pred_region
        // Predicated region
        $region25: #{tpu_custom_call.1} parent=23 // pred_check
          %p134 = pneg %p35
        $region26: #{tpu_custom_call.1} parent=23 // pred_check_branch
          %136 = sbr.rel (%p134) target = $region28
        $region27: #{tpu_custom_call.1} parent=23 // pred_region
          %s137 = sand.u32 %s25, 1
          %s138 = scalar_lea.sflag [#allocation4], %s137
          %s139 = sand.u32 %s25, 1
          %s140 = smul.addr %s139, 8
          %s141 = scalar_lea.vmem [#allocation3], %s140
          %s143 = ssub.s32 128, 128
          %144 = vsyncadd %s138, %s143
          %s145 = smul.addr %s15, 2
          %s146 = smul.addr %s145, 64
          %s147 = scalar_lea.hbm %s0, %s146
          %s149 = sshll.u32 %s141, 4
          %s150 = int_to_ptr.vmem [resolvable:$true] %s149
          %152 = dma.hbm_to_vmem [thread:$0]  %s147, 128, %s150, %s138
        $region28: #{tpu_custom_call.1} parent=23 // pred_fallthru
          _
      $region24: #{tpu_custom_call.1} parent=5 // pred_fallthru
        _
      %p153 = scmp.le.s32.totalorder 1, %s15
      %p154 = scmp.lt.s32.totalorder %s15, 3
      %p155 = pnand %p153, %p154
      %p156 = pneg %p155
      // Predicated region
      $region29: #{tpu_custom_call.1} parent=5 // pred_check
        _
      $region30: #{tpu_custom_call.1} parent=5 // pred_check_branch
        %158 = sbr.rel (%p155) target = $region32
      $region31: #{tpu_custom_call.1} parent=5 // pred_region
        %s159 = ssub.s32 %s15, 1
        %s160 = sand.u32 %s28, 1
        %s161 = scalar_lea.sflag [#allocation4], %s160
        %s162 = sand.u32 %s28, 1
        %s163 = smul.addr %s162, 8
        %s164 = scalar_lea.vmem [#allocation3], %s163
        // Predicated region
        $region33: #{tpu_custom_call.1} parent=31 // pred_check
          %p165 = pneg %p41
        $region34: #{tpu_custom_call.1} parent=31 // pred_check_branch
          %167 = sbr.rel (%p165) target = $region36
        $region35: #{tpu_custom_call.1} parent=31 // pred_region
          %168 = dma.done %s161, 128
        $region36: #{tpu_custom_call.1} parent=31 // pred_fallthru
          _
        %s169 = sand.u32 %s28, 1
        %s170 = scalar_lea.sflag [#allocation4], %s169
        %s171 = sand.u32 %s28, 1
        %s172 = smul.addr %s171, 8
        %s173 = scalar_lea.vmem [#allocation3], %s172
        %p174 = pneg %p41
        %p175 = pneg %p38
        %p176 = pneg %p62
        %p177 = pneg %p59
        %p178 = pneg %p83
        %p179 = pneg %p80
        %p180 = pneg %p109
        %p181 = pneg %p106
        %s182 = sand.u32 %s96, 1
        %s183 = scalar_lea.sflag [#allocation5], %s182
        %s184 = sand.u32 %s96, 1
        %s185 = smul.addr %s184, 16
        %s186 = scalar_lea.vmem [#allocation6], %s185
        %v187 = vld [vmem:[%s164] sm:$0xff]
        %v189 = vcombine.high %v187, %v187
        %191 = vst [vmem:[#allocation2] sm:$0xf] %v187
        %vm192 = vcmask 781312
        %193 = vst.msk [vmem:[#allocation2 + $0x8] sm:$0xf] %vm192, %v189
        %v194 = vld [vmem:[%s164] sm:$0xff]
        %v196 = vcombine.low %v194, %v194
        %197 = vrot.lane.b32.xlu0 %v196, 127
        %v198 = vpop.permute.xlu0 %197
        %199 = vrot.lane.b32.xlu0 %v194, 127
        %v200 = vpop.permute.xlu0 %199
        %vm201 = vcmask 1039360
        %v202 = vsel %vm201, %v198, %v200
        %205 = vst [vmem:[#allocation2] sm:$0xf0] %v202
        %vm206 = vcmask 785412
        %207 = vst.msk [vmem:[#allocation2 + $0x8] sm:$0xf0] %vm206, %v200
        %v208 = vld [vmem:[%s164] sm:$0xff]
        %v210 = vcombine.high %v208, %v208
        %211 = vrot.lane.b32.xlu0 %v208, 126
        %v212 = vpop.permute.xlu0 %211
        %213 = vrot.lane.b32.xlu0 %v210, 126
        %v214 = vpop.permute.xlu0 %213
        %vm215 = vcmask 1031168
        %v216 = vsel %vm215, %v212, %v214
        %219 = vst [vmem:[#allocation2 + $0x10] sm:$0xf] %v216
        %220 = vst.msk [vmem:[#allocation2 + $0x18] sm:$0xf] %vm192, %v214
        %v221 = vld [vmem:[%s164] sm:$0xff]
        %v223 = vcombine.low %v221, %v221
        %224 = vrot.lane.b32.xlu0 %v223, 112
        %v225 = vpop.permute.xlu0 %224
        %226 = vrot.lane.b32.xlu0 %v221, 112
        %v227 = vpop.permute.xlu0 %226
        %vm228 = vcmask 916480
        %v229 = vsel %vm228, %v225, %v227
        %232 = vst [vmem:[#allocation2 + $0x10] sm:$0xf0] %v229
        %233 = vst.msk [vmem:[#allocation2 + $0x18] sm:$0xf0] %vm206, %v227
        %v234 = vld [vmem:[%s164] sm:$0xff]
        %v236 = vcombine.high %v234, %v234
        %237 = vrot.lane.b32.xlu0 %v234, 111
        %v238 = vpop.permute.xlu0 %237
        %239 = vrot.lane.b32.xlu0 %v236, 111
        %v240 = vpop.permute.xlu0 %239
        %vm241 = vcmask 908288
        %v242 = vsel %vm241, %v238, %v240
        %245 = vst [vmem:[#allocation2 + $0x20] sm:$0xf] %v242
        %246 = vst.msk [vmem:[#allocation2 + $0x28] sm:$0xf] %vm192, %v240
        %v247 = vld [vmem:[%s164] sm:$0xff]
        %v249 = vcombine.low %v247, %v247
        %250 = vrot.lane.b32.xlu0 %v249, 110
        %v251 = vpop.permute.xlu0 %250
        %252 = vrot.lane.b32.xlu0 %v247, 110
        %v253 = vpop.permute.xlu0 %252
        %vm254 = vcmask 900096
        %v255 = vsel %vm254, %v251, %v253
        %258 = vst [vmem:[#allocation2 + $0x20] sm:$0xf0] %v255
        %259 = vst.msk [vmem:[#allocation2 + $0x28] sm:$0xf0] %vm206, %v253
        %v260 = vld [vmem:[%s164] sm:$0xff]
        %v262 = vcombine.high %v260, %v260
        %263 = vrot.lane.b32.xlu0 %v260, 96
        %v264 = vpop.permute.xlu0 %263
        %265 = vrot.lane.b32.xlu0 %v262, 96
        %v266 = vpop.permute.xlu0 %265
        %vm267 = vcmask 785408
        %v268 = vsel %vm267, %v264, %v266
        %271 = vst [vmem:[#allocation2 + $0x30] sm:$0xf] %v268
        %272 = vst.msk [vmem:[#allocation2 + $0x38] sm:$0xf] %vm192, %v266
        %v273 = vld [vmem:[%s164] sm:$0xff]
        %v275 = vcombine.low %v273, %v273
        %276 = vrot.lane.b32.xlu0 %v275, 95
        %v277 = vpop.permute.xlu0 %276
        %278 = vrot.lane.b32.xlu0 %v273, 95
        %v279 = vpop.permute.xlu0 %278
        %vm280 = vcmask 777216
        %v281 = vsel %vm280, %v277, %v279
        %284 = vst [vmem:[#allocation2 + $0x30] sm:$0xf0] %v281
        %vm285 = vcmask 777220
        %286 = vst.msk [vmem:[#allocation2 + $0x38] sm:$0xf0] %vm285, %v279
        %vm287 = vcmask 786172
        %288 = vst.msk [vmem:[#allocation2 + $0x38] sm:$0xf0] %vm287, 0.0
        %v289 = vld [vmem:[%s164] sm:$0xff]
        %v291 = vcombine.high %v289, %v289
        %292 = vrot.lane.b32.xlu0 %v289, 94
        %v293 = vpop.permute.xlu0 %292
        %294 = vrot.lane.b32.xlu0 %v291, 94
        %v295 = vpop.permute.xlu0 %294
        %vm296 = vcmask 769024
        %v297 = vsel %vm296, %v293, %v295
        %300 = vst [vmem:[#allocation2 + $0x40] sm:$0xf] %v297
        %vm301 = vcmask 764928
        %302 = vst.msk [vmem:[#allocation2 + $0x48] sm:$0xf] %vm301, %v295
        %vm303 = vcmask 782064
        %304 = vst.msk [vmem:[#allocation2 + $0x48] sm:$0xf] %vm303, 0.0
        %v305 = vld [vmem:[%s1] sm:$0xff]
        %v306 = vld [vmem:[#allocation2] sm:$0xff]
        %v307 = vld [vmem:[#allocation2 + $0x8] sm:$0xff]
        %v308 = vld [vmem:[#allocation2 + $0x10] sm:$0xff]
        %v309 = vld [vmem:[#allocation2 + $0x18] sm:$0xff]
        %v310 = vld [vmem:[#allocation2 + $0x20] sm:$0xff]
        %v311 = vld [vmem:[#allocation2 + $0x28] sm:$0xff]
        %v312 = vld [vmem:[#allocation2 + $0x30] sm:$0xff]
        %v313 = vld [vmem:[#allocation2 + $0x38] sm:$0xff]
        %v314 = vld [vmem:[#allocation2 + $0x40] sm:$0xf]
        %v315 = vld [vmem:[#allocation2 + $0x48] sm:$0xf]
        %v316 = vld [vmem:[%s2] sm:$0xff]
        %318 = vset.pattern.permute.xlu0 0
        %319 = vperm.xlu0 %318, %v316
        %v320 = vpop.permute.xlu0 %319
        %vm322 = vcmask 293888
        %v324 = vsel %vm322, %v305, 0
        %vm326 = vcmask 1043456
        %v328 = vsel %vm326, %v314, 0
        %v331 = vsel %vm326, %v315, 0
        %333 = vmatprep.subr.mxu0 %v307
        %334 = vmatpush1.msra.mxu0 %v306
        %335 = vmatprep.subr.mxu0 %v309
        %336 = vmatpush1.msra.mxu0 %v308
        %337 = vmatprep.subr.mxu0 %v311
        %338 = vmatpush1.msra.mxu0 %v310
        %339 = vmatprep.subr.mxu0 %v313
        %340 = vmatpush1.msra.mxu0 %v312
        %341 = vmatprep.subr.mxu0 %v331
        %342 = vmatpush1.msra.mxu0 %v328
        %343 = vmatprep.subr.mxu0 0.0
        %344 = vmatpush1.msra.mxu0 0.0
        %345 = vmatprep.subr.mxu0 0.0
        %346 = vmatpush1.msra.mxu0 0.0
        %347 = vmatprep.subr.mxu0 0.0
        %348 = vmatpush1.msra.mxu0 0.0
        %349 = vmatprep.subr.mxu0 0.0
        %350 = vmatpush1.msra.mxu0 0.0
        %351 = vmatprep.subr.mxu0 0.0
        %352 = vmatpush1.msra.mxu0 0.0
        %353 = vmatprep.subr.mxu0 0.0
        %354 = vmatpush1.msra.mxu0 0.0
        %355 = vmatprep.subr.mxu0 0.0
        %356 = vmatpush1.msra.mxu0 0.0
        %357 = vmatprep.subr.mxu0 0.0
        %358 = vmatpush1.msra.mxu0 0.0
        %359 = vmatprep.subr.mxu0 0.0
        %360 = vmatpush1.msra.mxu0 0.0
        %361 = vmatprep.subr.mxu0 0.0
        %362 = vmatpush1.msra.mxu0 0.0
        %363 = vmatprep.subr.mxu0 0.0
        %364 = vmatpush1.msra.mxu0 0.0
        %365 = vmatprep.subr.mxu0 0.0
        %366 = vmatpush1.msra.mxu0 0.0
        %367 = vmatprep.subr.mxu0 0.0
        %368 = vmatpush1.msra.mxu0 0.0
        %369 = vmatprep.subr.mxu0 0.0
        %370 = vmatpush1.msra.mxu0 0.0
        %371 = vmatprep.subr.mxu0 0.0
        %372 = vmatpush1.msra.mxu0 0.0
        %373 = vmatprep.subr.mxu0 0.0
        %374 = vmatpush1.msra.mxu0 0.0
        %375 = vmatprep.subr.mxu0 0.0
        %376 = vmatpush1.msra.mxu0 0.0
        %377 = vmatprep.subr.mxu0 0.0
        %378 = vmatpush1.msra.mxu0 0.0
        %379 = vmatprep.subr.mxu0 0.0
        %380 = vmatpush1.msra.mxu0 0.0
        %381 = vmatprep.subr.mxu0 0.0
        %382 = vmatpush1.msra.mxu0 0.0
        %383 = vmatprep.subr.mxu0 0.0
        %384 = vmatpush1.msra.mxu0 0.0
        %385 = vmatprep.subr.mxu0 0.0
        %386 = vmatpush1.msra.mxu0 0.0
        %387 = vmatprep.subr.mxu0 0.0
        %388 = vmatpush1.msra.mxu0 0.0
        %389 = vmatprep.subr.mxu0 0.0
        %390 = vmatpush1.msra.mxu0 0.0
        %391 = vmatprep.subr.mxu0 0.0
        %392 = vmatpush1.msra.mxu0 0.0
        %393 = vmatprep.subr.mxu0 0.0
        %394 = vmatpush1.msra.mxu0 0.0
        %395 = vmatprep.subr.mxu0 0.0
        %396 = vmatpush1.msra.mxu0 0.0
        %397 = vmatprep.mubr.f32.mxu0 0.0
        %398 = vmatmul.mubr.f32.gmra.mrb[0].mxu0 %v324
        %v399 = vpop.f32.mrb[0].mxu0
        %v400 = vadd.f32 %v320, %v399
        %v401 = vpop.f32.mrb[0].mxu0
        %v402 = vadd.f32 %v320, %v401
        %403 = vdwg.mxu0
        %v404 = vmax.f32 %v400, 0.0
        %v405 = vmax.f32 %v402, 0.0
        %vm406 = vcmask 113664
        %407 = vst.msk [vmem:[%s186] sm:$0xff] %vm406, %v404
        %409 = vrot.lane.b32.xlu0 %v404, 126
        %v410 = vpop.permute.xlu0 %409
        %vm412 = vcmask 228464
        %413 = vst.msk [vmem:[%s186] sm:$0xff] %vm412, %v410
        %414 = vrot.lane.b32.xlu0 %v404, 124
        %v415 = vpop.permute.xlu0 %414
        %vm417 = vcmask 343264
        %418 = vst.msk [vmem:[%s186] sm:$0xff] %vm417, %v415
        %419 = vrot.lane.b32.xlu0 %v404, 122
        %v420 = vpop.permute.xlu0 %419
        %vm422 = vcmask 458064
        %423 = vst.msk [vmem:[%s186] sm:$0xff] %vm422, %v420
        %424 = vrot.lane.b32.xlu0 %v404, 120
        %v425 = vpop.permute.xlu0 %424
        %vm427 = vcmask 572864
        %428 = vst.msk [vmem:[%s186] sm:$0xff] %vm427, %v425
        %429 = vrot.lane.b32.xlu0 %v404, 118
        %v430 = vpop.permute.xlu0 %429
        %vm432 = vcmask 687664
        %433 = vst.msk [vmem:[%s186] sm:$0xff] %vm432, %v430
        %434 = vrot.lane.b32.xlu0 %v404, 116
        %v435 = vpop.permute.xlu0 %434
        %vm437 = vcmask 802464
        %438 = vst.msk [vmem:[%s186] sm:$0xff] %vm437, %v435
        %439 = vrot.lane.b32.xlu0 %v404, 114
        %v440 = vpop.permute.xlu0 %439
        %vm442 = vcmask 917264
        %443 = vst.msk [vmem:[%s186] sm:$0xff] %vm442, %v440
        %445 = vrot.lane.b32.xlu0 %v405, 112
        %v446 = vpop.permute.xlu0 %445
        %vm448 = vcmask 1032064
        %449 = vst.msk [vmem:[%s186] sm:$0xff] %vm448, %v446
        %450 = vrot.lane.b32.xlu0 %v405, 110
        %v451 = vpop.permute.xlu0 %450
        %vm453 = vcmask 1048560
        %454 = vst.msk [vmem:[%s186] sm:$0xff] %vm453, %v451
        %vm455 = vcmask 97280
        %456 = vst.msk [vmem:[%s186 + $0x8] sm:$0xff] %vm455, %v451
        %457 = vrot.lane.b32.xlu0 %v405, 108
        %v458 = vpop.permute.xlu0 %457
        %vm460 = vcmask 212064
        %461 = vst.msk [vmem:[%s186 + $0x8] sm:$0xff] %vm460, %v458
        %462 = vrot.lane.b32.xlu0 %v405, 106
        %v463 = vpop.permute.xlu0 %462
        %vm465 = vcmask 326864
        %466 = vst.msk [vmem:[%s186 + $0x8] sm:$0xff] %vm465, %v463
        %467 = vrot.lane.b32.xlu0 %v405, 104
        %v468 = vpop.permute.xlu0 %467
        %vm470 = vcmask 441664
        %471 = vst.msk [vmem:[%s186 + $0x8] sm:$0xff] %vm470, %v468
        %472 = vrot.lane.b32.xlu0 %v405, 102
        %v473 = vpop.permute.xlu0 %472
        %vm475 = vcmask 556464
        %476 = vst.msk [vmem:[%s186 + $0x8] sm:$0xff] %vm475, %v473
        %s477 = sand.u32 %s96, 1
        %s478 = scalar_lea.sflag [#allocation5], %s477
        %s479 = sand.u32 %s96, 1
        %s480 = smul.addr %s479, 16
        %s481 = scalar_lea.vmem [#allocation6], %s480
        // Predicated region
        $region37: #{tpu_custom_call.1} parent=31 // pred_check
          %p482 = pneg %p106
        $region38: #{tpu_custom_call.1} parent=31 // pred_check_branch
          %484 = sbr.rel (%p482) target = $region40
        $region39: #{tpu_custom_call.1} parent=31 // pred_region
          %s486 = ssub.s32 256, 256
          %487 = vsyncadd %s478, %s486
          %s488 = smul.addr %s20, 2
          %s489 = smul.addr %s488, 128
          %s490 = scalar_lea.hbm %s3, %s489
          %s492 = sshll.u32 %s481, 4
          %s493 = int_to_ptr.vmem [resolvable:$true] %s492
          %495 = dma.vmem_to_hbm [thread:$0]  %s493, 256, %s490, %s478
        $region40: #{tpu_custom_call.1} parent=31 // pred_fallthru
          _
      $region32: #{tpu_custom_call.1} parent=5 // pred_fallthru
        _
      %p496 = scmp.le.s32.totalorder 2, %s15
      // Predicated region
      $region41: #{tpu_custom_call.1} parent=5 // pred_check
        %p497 = pneg %p496
      $region42: #{tpu_custom_call.1} parent=5 // pred_check_branch
        %499 = sbr.rel (%p497) target = $region44
      $region43: #{tpu_custom_call.1} parent=5 // pred_region
        %s500 = ssub.s32 %s15, 2
        // Predicated region
        $region45: #{tpu_custom_call.1} parent=43 // pred_check
          %p501 = pneg %p112
        $region46: #{tpu_custom_call.1} parent=43 // pred_check_branch
          %503 = sbr.rel (%p501) target = $region48
        $region47: #{tpu_custom_call.1} parent=43 // pred_region
          %s504 = sand.u32 %s97, 1
          %s505 = scalar_lea.sflag [#allocation5], %s504
          %s506 = sand.u32 %s97, 1
          %s507 = smul.addr %s506, 16
          %s508 = scalar_lea.vmem [#allocation6], %s507
          %509 = dma.done %s505, 256
        $region48: #{tpu_custom_call.1} parent=43 // pred_fallthru
          _
      $region44: #{tpu_custom_call.1} parent=5 // pred_fallthru
        _
    $region6: #{tpu_custom_call.1} parent=1 // loop_footer
      %s19 = sadd.s32 1, %s15
    $region7: #{tpu_custom_call.1} parent=1 // loop_footer_branch
      %14 = sbr.rel target = $region3
    $region8: #{tpu_custom_call.1} parent=1 // loop_exit
      _
    %510 = vsyncpa [#allocation4], 1
    %s511 = scalar_lea.sflag [#allocation4], 1
    %512 = vsyncpa %s511, 1
    %513 = vsyncpa [#allocation5], 1
    %s514 = scalar_lea.sflag [#allocation5], 1
    %515 = vsyncpa %s514, 1

</llo_original>
